<compile_context>
chip_gen: v5e
topology: v5e:2x2
jax: 0.10.0
libtpu: 0.0.40
codegen_flags: <defaults>
</compile_context>

<pallas_src>
import math

import jax
import jax.numpy as jnp
from jax.experimental import pallas as pl
from jax.experimental.pallas import tpu as pltpu


def _round_up(x, m):
    return ((x + m - 1) // m) * m


def _cdiv(a, b):
    return -(-a // b)


# ---------------------------------------------------------------------------
# Kernels
# ---------------------------------------------------------------------------
def _linear_f32_bias_kernel(x_ref, w_ref, b_ref, o_ref):
    # f32 output: accumulate directly into the resident output block.
    @pl.when(pl.program_id(2) == 0)
    def _():
        o_ref[...] = jnp.zeros_like(o_ref)

    o_ref[...] += jnp.dot(x_ref[...], w_ref[...],
                          preferred_element_type=jnp.float32)

    @pl.when(pl.program_id(2) == pl.num_programs(2) - 1)
    def _():
        o_ref[...] += b_ref[...]


def _linear_f32_kernel(x_ref, w_ref, o_ref):
    @pl.when(pl.program_id(2) == 0)
    def _():
        o_ref[...] = jnp.zeros_like(o_ref)

    o_ref[...] += jnp.dot(x_ref[...], w_ref[...],
                          preferred_element_type=jnp.float32)


def _linear_acc_bias_kernel(x_ref, w_ref, b_ref, o_ref, acc_ref):
    # Narrow output dtype: keep an f32 accumulator scratch, cast at the end.
    @pl.when(pl.program_id(2) == 0)
    def _():
        acc_ref[...] = jnp.zeros_like(acc_ref)

    acc_ref[...] += jnp.dot(x_ref[...], w_ref[...],
                            preferred_element_type=jnp.float32)

    @pl.when(pl.program_id(2) == pl.num_programs(2) - 1)
    def _():
        o_ref[...] = (acc_ref[...] + b_ref[...]).astype(o_ref.dtype)


def _linear_acc_kernel(x_ref, w_ref, o_ref, acc_ref):
    @pl.when(pl.program_id(2) == 0)
    def _():
        acc_ref[...] = jnp.zeros_like(acc_ref)

    acc_ref[...] += jnp.dot(x_ref[...], w_ref[...],
                            preferred_element_type=jnp.float32)

    @pl.when(pl.program_id(2) == pl.num_programs(2) - 1)
    def _():
        o_ref[...] = acc_ref[...].astype(o_ref.dtype)


# ---------------------------------------------------------------------------
# Tile / VMEM planning
# ---------------------------------------------------------------------------
def _vmem_capacity_bytes():
    try:
        return int(pltpu.get_tpu_info().vmem_capacity_bytes)
    except Exception:
        # Conservative fallback (v7x-sized VMEM) so we never over-commit.
        return 64 * 1024 * 1024


def _vmem_estimate(tm, tn, tk, in_isz, out_isz, use_acc, w_bufs=2):
    xb = tm * tk * in_isz
    wb = tk * tn * in_isz
    ob = tm * tn * out_isz
    bb = tn * 4
    acc = tm * tn * 4 if use_acc else 0
    return 2 * (xb + ob + bb) + w_bufs * wb + acc


def _even_tile(dim, target, align):
    """Aligned tile <= target that splits `dim` into equal blocks with minimal
    overshoot (dim is already a multiple of `align`)."""
    target = max(align, min(target, dim))
    nb = _cdiv(dim, target)
    return _round_up(_cdiv(dim, nb), align)


def _select_tiles(M_min, N_min, K_min, in_isz, out_isz, use_acc, budget, sub):
    # Large starting targets; the budget loop shrinks them per generation.
    tgt_m, tgt_n = 1024, 1024
    tgt_k = 4096 if in_isz <= 2 else 2048

    tm = _even_tile(M_min, tgt_m, sub)
    tn = _even_tile(N_min, tgt_n, 128)
    tk = _even_tile(K_min, tgt_k, 128)

    for _ in range(64):
        if _vmem_estimate(tm, tn, tk, in_isz, out_isz, use_acc) <= budget:
            break
        if tk > 512:
            tk = _even_tile(K_min, tk // 2, 128)
        elif tn > 256:
            tn = _even_tile(N_min, tn // 2, 128)
        elif tm > 256:
            tm = _even_tile(M_min, tm // 2, sub)
        elif tk > 128:
            tk = _even_tile(K_min, tk // 2, 128)
        elif tn > 128:
            tn = _even_tile(N_min, tn // 2, 128)
        elif tm > sub:
            tm = _even_tile(M_min, tm // 2, sub)
        else:
            break
    return tm, tn, tk


# ---------------------------------------------------------------------------
# Wrapper (forward pass of CustomLinear)
# ---------------------------------------------------------------------------
def custom_linear(x, weight, bias=None):
    """Pallas equivalent of CustomLinear.forward.

    x:      [..., in_features]
    weight: [out_features, in_features]
    bias:   [out_features] or None
    returns [..., out_features]
    """
    out_features, in_features = weight.shape
    assert x.shape[-1] == in_features

    lead_shape = x.shape[:-1]
    M = math.prod(lead_shape) if lead_shape else 1

    compute_dtype = jnp.promote_types(x.dtype, weight.dtype)
    out_dtype = compute_dtype

    if M == 0:
        return jnp.zeros((*lead_shape, out_features), out_dtype)

    x2d = x.reshape(M, in_features).astype(compute_dtype)
    # One host-side transpose to [K, N]; keeps the contraction K-major so the
    # kernel never needs an in-kernel (XLU) transpose of the weight tile.
    w_kn = weight.astype(compute_dtype).T

    in_isz = jnp.dtype(compute_dtype).itemsize
    out_isz = jnp.dtype(out_dtype).itemsize
    sub = 16 if in_isz == 2 else 8  # second-minor alignment for this dtype

    # --- hardware-minimum padding targets ---
    M_min = max(_round_up(M, sub), sub)
    N_min = max(_round_up(out_features, 128), 128)
    K_min = max(_round_up(in_features, 128), 128)

    # --- generation-aware VMEM budget & tile selection ---
    vmem_cap = _vmem_capacity_bytes()
    budget = int(vmem_cap * 0.65)              # for tile sizing
    vmem_limit = min(100 * 1024 * 1024, int(vmem_cap * 0.75))

    use_acc = jnp.dtype(out_dtype) != jnp.dtype(jnp.float32)
    tm, tn, tk = _select_tiles(M_min, N_min, K_min, in_isz, out_isz,
                               use_acc, budget, sub)

    # Megacore: don't let both parallel axes collapse to a single block.
    if _cdiv(M_min, tm) == 1 and _cdiv(N_min, tn) == 1 and M_min >= 2 * sub:
        tm = _round_up(_cdiv(M_min, 2), sub)

    grid_m, grid_n, grid_k = _cdiv(M_min, tm), _cdiv(N_min, tn), _cdiv(K_min, tk)
    M_pad, N_pad, K_pad = grid_m * tm, grid_n * tn, grid_k * tk

    # --- pad operands only when needed (zeros contribute nothing) ---
    xp = x2d
    if (M_pad, K_pad) != (M, in_features):
        xp = jnp.zeros((M_pad, K_pad), compute_dtype).at[:M, :in_features].set(x2d)
    wp = w_kn
    if (K_pad, N_pad) != (in_features, out_features):
        wp = (jnp.zeros((K_pad, N_pad), compute_dtype)
              .at[:in_features, :out_features].set(w_kn))

    # --- BlockSpecs ---
    x_spec = pl.BlockSpec((tm, tk), lambda i, j, k: (i, k))
    out_spec = pl.BlockSpec((tm, tn), lambda i, j, k: (i, j))

    w_map = lambda i, j, k: (k, j)
    deep_w = (M_pad <= 64 and grid_k >= 3 and
              _vmem_estimate(tm, tn, tk, in_isz, out_isz, use_acc, w_bufs=3)
              <= vmem_limit)
    if deep_w:
        try:
            w_spec = pl.BlockSpec((tk, tn), w_map, pipeline_mode=pl.Buffered(3))
        except TypeError:
            w_spec = pl.BlockSpec((tk, tn), w_map)
    else:
        w_spec = pl.BlockSpec((tk, tn), w_map)

    cparams = pltpu.CompilerParams(
        dimension_semantics=("parallel", "parallel", "arbitrary"),
        vmem_limit_bytes=vmem_limit,
    )

    cost = pl.CostEstimate(
        flops=2 * M_pad * N_pad * K_pad,
        transcendentals=0,
        bytes_accessed=int(M_pad * K_pad * in_isz
                           + K_pad * N_pad * in_isz
                           + M_pad * N_pad * out_isz
                           + (N_pad * 4 if bias is not None else 0)),
    )

    grid = (grid_m, grid_n, grid_k)
    scratch = [] if not use_acc else [pltpu.VMEM((tm, tn), jnp.float32)]

    if bias is not None:
        bp = (jnp.zeros((1, N_pad), jnp.float32)
              .at[0, :out_features].set(bias.astype(jnp.float32)))
        if not use_acc:
            bp = bp.astype(out_dtype)
        kernel = _linear_f32_bias_kernel if not use_acc else _linear_acc_bias_kernel
        in_specs = [x_spec, w_spec, pl.BlockSpec((1, tn), lambda i, j, k: (0, j))]
        args = (xp, wp, bp)
    else:
        kernel = _linear_f32_kernel if not use_acc else _linear_acc_kernel
        in_specs = [x_spec, w_spec]
        args = (xp, wp)

    out_pad = pl.pallas_call(
        kernel,
        out_shape=jax.ShapeDtypeStruct((M_pad, N_pad), out_dtype),
        grid_spec=pltpu.PrefetchScalarGridSpec(
            num_scalar_prefetch=0,
            grid=grid,
            in_specs=in_specs,
            out_specs=out_spec,
            scratch_shapes=scratch,
        ),
        compiler_params=cparams,
        cost_estimate=cost,
    )(*args)

    out2d = out_pad[:M, :out_features]
    return out2d.reshape(*lead_shape, out_features)


def init_params(key, in_features, out_features, use_bias=True):
    """Deterministic init mirroring nn.Linear-style kaiming_uniform(a=sqrt(5))."""
    kw, kb = jax.random.split(key)
    bound = 1.0 / math.sqrt(in_features)
    weight = jax.random.uniform(
        kw, (out_features, in_features), jnp.float32, -bound, bound)
    bias = None
    if use_bias:
        bias = jax.random.uniform(kb, (out_features,), jnp.float32, -bound, bound)
    return weight, bias


if __name__ == "__main__":
    key = jax.random.PRNGKey(0)
    k_x, k_p = jax.random.split(key)

    batch, seq, in_features, out_features = 2, 8, 32, 64
    x = jax.random.normal(k_x, (batch, seq, in_features), jnp.float32)
    weight, bias = init_params(k_p, in_features, out_features, use_bias=True)

    # Bias path
    out = jax.block_until_ready(custom_linear(x, weight, bias))
    ref = jnp.matmul(x, weight.T) + bias
    assert out.shape == (batch, seq, out_features)
    assert jnp.allclose(out, ref, atol=1e-5, rtol=1e-5)

    # No-bias path (bias=False in the original module)
    out_nb = jax.block_until_ready(custom_linear(x, weight, None))
    ref_nb = jnp.matmul(x, weight.T)
    assert jnp.allclose(out_nb, ref_nb, atol=1e-5, rtol=1e-5)

    print("KERNEL_OK")
</pallas_src>

<mosaic_0001>
module attributes {stable_mosaic.version = 11 : i64} {
  func.func @_linear_f32_bias_kernel(%arg0: i32, %arg1: i32, %arg2: i32, %arg3: memref<8x128xf32, #tpu.memory_space<vmem>>, %arg4: memref<128x128xf32, #tpu.memory_space<vmem>>, %arg5: memref<1x128xf32, #tpu.memory_space<vmem>>, %arg6: memref<8x128xf32, #tpu.memory_space<vmem>>) attributes {dimension_semantics = [#tpu.dimension_semantics<parallel>, #tpu.dimension_semantics<parallel>, #tpu.dimension_semantics<arbitrary>], iteration_bounds = array<i64: 2, 1, 1>, scalar_prefetch = 0 : i64, scratch_operands = 0 : i64, tpu.core_type = #tpu.core_type<tc>, window_params = [{transform_indices = @transform_0, window_bounds = array<i64: 8, 128>}, {transform_indices = @transform_1, window_bounds = array<i64: 128, 128>}, {transform_indices = @transform_2, window_bounds = array<i64: 1, 128>}, {transform_indices = @transform_3, window_bounds = array<i64: 8, 128>}]} {
    %c0_i32 = arith.constant 0 : i32
    %0 = arith.cmpi eq, %arg2, %c0_i32 : i32
    %1 = arith.extui %0 : i1 to i32
    %c0_i32_0 = arith.constant 0 : i32
    %2 = arith.cmpi ne, %1, %c0_i32_0 : i32
    scf.if %2 {
      %cst_10 = arith.constant 0.000000e+00 : f32
      %12 = vector.broadcast %cst_10 : f32 to vector<8x128xf32>
      %c0_11 = arith.constant 0 : index
      %c0_12 = arith.constant 0 : index
      %13 = vector.load %arg6[%c0_11, %c0_12] : memref<8x128xf32, #tpu.memory_space<vmem>>, vector<8x128xf32>
      tpu.vector_store %arg6[%c0_11, %c0_12], %12 {strides = array<i32>} : memref<8x128xf32, #tpu.memory_space<vmem>>, vector<8x128xf32>,
    } else {
    }
    %c0 = arith.constant 0 : index
    %c0_1 = arith.constant 0 : index
    %3 = vector.load %arg6[%c0, %c0_1] : memref<8x128xf32, #tpu.memory_space<vmem>>, vector<8x128xf32>
    %c0_2 = arith.constant 0 : index
    %c0_3 = arith.constant 0 : index
    %4 = vector.load %arg3[%c0_2, %c0_3] : memref<8x128xf32, #tpu.memory_space<vmem>>, vector<8x128xf32>
    %c0_4 = arith.constant 0 : index
    %c0_5 = arith.constant 0 : index
    %5 = vector.load %arg4[%c0_4, %c0_5] : memref<128x128xf32, #tpu.memory_space<vmem>>, vector<128x128xf32>
    %cst = arith.constant dense<0.000000e+00> : vector<8x128xf32>
    %6 = tpu.matmul %4, %5, %cst {dimension_numbers = #tpu.dot_dimension_numbers<[1], [0], [0], [1], [0, 0, 1, 1], [], []>} : vector<8x128xf32>, vector<128x128xf32>, vector<8x128xf32> -> vector<8x128xf32>
    %7 = arith.addf %3, %6 : vector<8x128xf32>
    %c0_6 = arith.constant 0 : index
    %c0_7 = arith.constant 0 : index
    %8 = vector.load %arg6[%c0_6, %c0_7] : memref<8x128xf32, #tpu.memory_space<vmem>>, vector<8x128xf32>
    tpu.vector_store %arg6[%c0_6, %c0_7], %7 {strides = array<i32>} : memref<8x128xf32, #tpu.memory_space<vmem>>, vector<8x128xf32>,
    %c0_i32_8 = arith.constant 0 : i32
    %9 = arith.cmpi eq, %arg2, %c0_i32_8 : i32
    %10 = arith.extui %9 : i1 to i32
    %c0_i32_9 = arith.constant 0 : i32
    %11 = arith.cmpi ne, %10, %c0_i32_9 : i32
    scf.if %11 {
      %c0_10 = arith.constant 0 : index
      %c0_11 = arith.constant 0 : index
      %12 = vector.load %arg6[%c0_10, %c0_11] : memref<8x128xf32, #tpu.memory_space<vmem>>, vector<8x128xf32>
      %c0_12 = arith.constant 0 : index
      %c0_13 = arith.constant 0 : index
      %13 = vector.load %arg5[%c0_12, %c0_13] : memref<1x128xf32, #tpu.memory_space<vmem>>, vector<1x128xf32>
      %14 = vector.broadcast %13 : vector<1x128xf32> to vector<8x128xf32>
      %15 = arith.addf %12, %14 : vector<8x128xf32>
      %c0_14 = arith.constant 0 : index
      %c0_15 = arith.constant 0 : index
      %16 = vector.load %arg6[%c0_14, %c0_15] : memref<8x128xf32, #tpu.memory_space<vmem>>, vector<8x128xf32>
      tpu.vector_store %arg6[%c0_14, %c0_15], %15 {strides = array<i32>} : memref<8x128xf32, #tpu.memory_space<vmem>>, vector<8x128xf32>,
    } else {
    }
    return
  }
  func.func @transform_0(%arg0: i32, %arg1: i32, %arg2: i32) -> (i32, i32) {
    %c0_i32 = arith.constant 0 : i32
    return %arg0, %arg2 : i32, i32
  }
  func.func @transform_1(%arg0: i32, %arg1: i32, %arg2: i32) -> (i32, i32) {
    %c0_i32 = arith.constant 0 : i32
    return %arg2, %arg1 : i32, i32
  }
  func.func @transform_2(%arg0: i32, %arg1: i32, %arg2: i32) -> (i32, i32) {
    %c0_i32 = arith.constant 0 : i32
    %c0_i32_0 = arith.constant 0 : i32
    return %c0_i32, %arg1 : i32, i32
  }
  func.func @transform_3(%arg0: i32, %arg1: i32, %arg2: i32) -> (i32, i32) {
    %c0_i32 = arith.constant 0 : i32
    return %arg0, %arg1 : i32, i32
  }
}

</mosaic_0001>

<llo_original>
// kernel: tpu_custom_call.1
$region0: #{tpu_custom_call.1}
  #allocation0 [shape = 'u32[]', space=smem, size = 0x4, offset = 0x4, fixed_abs, tag = 'smem constant byte address 0x4 - core index']
  #allocation1 [shape = 'u32[72,128]{1,0:T(1,128)}', space=vmem, size = 0x9000, scoped, tag = 'internal scratch']
  %s0 = inlined_call_operand.hbm [shape: f32[16,128], index: 0, kind: input, shape index: {}]
  %s1 = inlined_call_operand.hbm [shape: f32[128,128], index: 1, kind: input, shape index: {}]
  %s2 = inlined_call_operand.vmem [shape: f32[1,128], index: 2, kind: input, shape index: {}]
  %s3 = inlined_call_operand.hbm [shape: f32[16,128], index: 3, kind: output, shape index: {}]
  %s4 = sld [smem:[#allocation0]]
  $region61: #{tpu_custom_call.1} parent=0
    _
  %s6 = ssub.s32 1, %s4
  %s7 = scalar_select 0, %s6, %s4
  $region1: #{tpu_custom_call.1} parent=0
    #allocation2 [shape = 'u8[8192]{0}', space=vmem, size = 0x2000, scoped, tag = 'input window, operand 0']
    #allocation3 [shape = 's32[2]{0}', space=sflag, size = 0x8, scoped, tag = 'scoped memory for tpu_custom_call.1']
    #allocation4 [shape = 's32[2]{0}', space=sflag, size = 0x8, scoped, tag = 'scoped memory for tpu_custom_call.1']
    #allocation5 [shape = 'u8[65536]{0}', space=vmem, size = 0x10000, scoped, tag = 'input window, operand 1, single buffered']
    #allocation6 [shape = 's32[1]{0}', space=sflag, size = 0x4, scoped, tag = 'scoped memory for tpu_custom_call.1']
    #allocation7 [shape = 'u8[8192]{0}', space=vmem, size = 0x2000, scoped, tag = 'output window, operand 0']
    %8 = vsyncpa [#allocation3], 0
    %s9 = scalar_lea.sflag [#allocation3], 1
    %10 = vsyncpa %s9, 0
    %11 = vsyncpa [#allocation6], 0
    %12 = vsyncpa [#allocation4], 0
    %s13 = scalar_lea.sflag [#allocation4], 1
    %14 = vsyncpa %s13, 0
    loop: start=0, step=1, limit=4
    $region2: #{tpu_custom_call.1} parent=1 // loop_pre_header
      _
    $region3: #{tpu_custom_call.1} parent=1 // loop_header
      %s16 = sphi 0, %s20
      %p17 = scmp.ge.s32.totalorder %s16, 4
      %s23 = sphi 0, %s42
      %s24 = sphi 0, %s38
      %s25 = sphi 0, %s34
      %s26 = sphi 0, %s23
      %s27 = sphi 0, %s24
      %s28 = sphi 0, %s25
      %s29 = sphi 0, %s26
      %s30 = sphi 0, %s27
      %s31 = sphi 0, %s28
      %s47 = sphi 0, %s49
      %s50 = sphi 0, %s47
      %s51 = sphi 0, %s50
      %s67 = sphi 0, %s51
      %s75 = sphi 0, %s77
      %s78 = sphi 0, %s75
      %s79 = sphi 0, %s78
      %s95 = sphi 0, %s79
      %s101 = sphi 0, %s103
      %s104 = sphi 0, %s101
      %s105 = sphi 0, %s104
      %s121 = sphi 0, %s105
      %s129 = sphi 0, %s131
      %s132 = sphi 0, %s129
      %s133 = sphi 0, %s132
      %s149 = sphi 0, %s133
    $region4: #{tpu_custom_call.1} parent=1 // loop_header_branch
      %19 = sbr.rel (%p17) target = $region8
    $region5: #{tpu_custom_call.1} parent=1 // loop_body
      %s21 = ssub.s32 %s16, 1
      %s22 = ssub.s32 %s16, 2
      %s32 = sadd.s32 1, %s25
      %p33 = scmp.ge.s32.totalorder %s32, 1
      %s34 = scalar_select %p33, 0, %s32
      %s35 = sadd.s32 1, %s24
      %s36 = scalar_select %p33, %s35, %s24
      %p37 = scmp.ge.s32.totalorder %s36, 1
      %s38 = scalar_select %p37, 0, %s36
      %s39 = sadd.s32 1, %s23
      %s40 = scalar_select %p37, %s39, %s23
      %p41 = scmp.ge.s32.totalorder %s40, 2
      %s42 = scalar_select %p41, 0, %s40
      %s43 = ssub.s32 %s23, %s42
      %s44 = ssub.s32 %s25, %s34
      %s45 = sor.u32 %s43, %s44
      %p46 = scmp.eq.s32.totalorder %s45, 0
      %s48 = sadd.s32 %s47, 1
      %s49 = scalar_select %p46, %s47, %s48
      %p52 = pneg %p46
      %p53 = scmp.eq.s32.totalorder %s16, 1
      %p54 = por %p52, %p53
      %p55 = scmp.ne.s32.totalorder %s47, %s50
      %p56 = scmp.eq.s32.totalorder %s16, 0
      %p57 = por %p55, %p56
      %p58 = scmp.ne.s32.totalorder %s47, %s50
      %p59 = scmp.eq.s32.totalorder %s21, 1
      %p60 = por %p58, %p59
      %p61 = scmp.ne.s32.totalorder %s50, %s51
      %p62 = scmp.eq.s32.totalorder %s21, 0
      %p63 = por %p61, %p62
      %p64 = scmp.ne.s32.totalorder %s50, %s51
      %p65 = scmp.eq.s32.totalorder %s22, 1
      %p66 = por %p64, %p65
      %p68 = scmp.ne.s32.totalorder %s51, %s67
      %p69 = scmp.eq.s32.totalorder %s22, 0
      %p70 = por %p68, %p69
      %s71 = ssub.s32 %s25, %s34
      %s72 = ssub.s32 %s24, %s38
      %s73 = sor.u32 %s71, %s72
      %p74 = scmp.eq.s32.totalorder %s73, 0
      %s76 = sadd.s32 %s75, 1
      %s77 = scalar_select %p74, %s75, %s76
      %p80 = pneg %p74
      %p81 = scmp.eq.s32.totalorder %s16, 1
      %p82 = por %p80, %p81
      %p83 = scmp.ne.s32.totalorder %s75, %s78
      %p84 = scmp.eq.s32.totalorder %s16, 0
      %p85 = por %p83, %p84
      %p86 = scmp.ne.s32.totalorder %s75, %s78
      %p87 = scmp.eq.s32.totalorder %s21, 1
      %p88 = por %p86, %p87
      %p89 = scmp.ne.s32.totalorder %s78, %s79
      %p90 = scmp.eq.s32.totalorder %s21, 0
      %p91 = por %p89, %p90
      %p92 = scmp.ne.s32.totalorder %s78, %s79
      %p93 = scmp.eq.s32.totalorder %s22, 1
      %p94 = por %p92, %p93
      %p96 = scmp.ne.s32.totalorder %s79, %s95
      %p97 = scmp.eq.s32.totalorder %s22, 0
      %p98 = por %p96, %p97
      %s99 = ssub.s32 %s24, %s38
      %p100 = scmp.eq.s32.totalorder %s99, 0
      %s102 = sadd.s32 %s101, 1
      %s103 = scalar_select %p100, %s101, %s102
      %p106 = pneg %p100
      %p107 = scmp.eq.s32.totalorder %s16, 1
      %p108 = por %p106, %p107
      %p109 = scmp.ne.s32.totalorder %s101, %s104
      %p110 = scmp.eq.s32.totalorder %s16, 0
      %p111 = por %p109, %p110
      %p112 = scmp.ne.s32.totalorder %s101, %s104
      %p113 = scmp.eq.s32.totalorder %s21, 1
      %p114 = por %p112, %p113
      %p115 = scmp.ne.s32.totalorder %s104, %s105
      %p116 = scmp.eq.s32.totalorder %s21, 0
      %p117 = por %p115, %p116
      %p118 = scmp.ne.s32.totalorder %s104, %s105
      %p119 = scmp.eq.s32.totalorder %s22, 1
      %p120 = por %p118, %p119
      %p122 = scmp.ne.s32.totalorder %s105, %s121
      %p123 = scmp.eq.s32.totalorder %s22, 0
      %p124 = por %p122, %p123
      %s125 = ssub.s32 %s23, %s42
      %s126 = ssub.s32 %s24, %s38
      %s127 = sor.u32 %s125, %s126
      %p128 = scmp.eq.s32.totalorder %s127, 0
      %s130 = sadd.s32 %s129, 1
      %s131 = scalar_select %p128, %s129, %s130
      %p134 = pneg %p128
      %p135 = scmp.eq.s32.totalorder %s16, 1
      %p136 = por %p134, %p135
      %p137 = scmp.ne.s32.totalorder %s129, %s132
      %p138 = scmp.eq.s32.totalorder %s16, 0
      %p139 = por %p137, %p138
      %p140 = scmp.ne.s32.totalorder %s129, %s132
      %p141 = scmp.eq.s32.totalorder %s21, 1
      %p142 = por %p140, %p141
      %p143 = scmp.ne.s32.totalorder %s132, %s133
      %p144 = scmp.eq.s32.totalorder %s21, 0
      %p145 = por %p143, %p144
      %p146 = scmp.ne.s32.totalorder %s132, %s133
      %p147 = scmp.eq.s32.totalorder %s22, 1
      %p148 = por %p146, %p147
      %p150 = scmp.ne.s32.totalorder %s133, %s149
      %p151 = scmp.eq.s32.totalorder %s22, 0
      %p152 = por %p150, %p151
      %p153 = scmp.le.s32.totalorder 1, %s16
      %p154 = scmp.lt.s32.totalorder %s16, 3
      %p155 = pnand %p153, %p154
      %p156 = pneg %p155
      // Predicated region
      $region9: #{tpu_custom_call.1} parent=5 // pred_check
        _
      $region10: #{tpu_custom_call.1} parent=5 // pred_check_branch
        %158 = sbr.rel (%p155) target = $region12
      $region11: #{tpu_custom_call.1} parent=5 // pred_region
        %s159 = ssub.s32 %s16, 1
        // Predicated region
        $region13: #{tpu_custom_call.1} parent=11 // pred_check
          %p160 = pneg %p91
        $region14: #{tpu_custom_call.1} parent=11 // pred_check_branch
          %162 = sbr.rel (%p160) target = $region16
        $region15: #{tpu_custom_call.1} parent=11 // pred_region
          %s163 = smul.u32 16, %s28
          %165 = vsyncadd [#allocation6], 0
          %s166 = sadd.s32 %s27, %s163
          %s167 = smul.addr %s166, 8
          %s168 = scalar_lea.hbm %s1, %s167
          %s169 = sshll.u32 %s168, 4
          %s170 = int_to_ptr.hbm [resolvable:$true] %s169
          %s171 = sshll.u32 [#allocation5], 4
          %s172 = int_to_ptr.vmem [resolvable:$true] %s171
          %177 = dma.hbm_to_vmem [thread:$0]  %s170, 2048, %s172, [#allocation6], 128, 128, 8
        $region16: #{tpu_custom_call.1} parent=11 // pred_fallthru
          _
        // Predicated region
        $region17: #{tpu_custom_call.1} parent=11 // pred_check
          %p178 = pneg %p117
        $region18: #{tpu_custom_call.1} parent=11 // pred_check_branch
          %180 = sbr.rel (%p178) target = $region20
        $region19: #{tpu_custom_call.1} parent=11 // pred_region
          %p181 = scmp.lt.s32.totalorder %s27, 0
          %s182 = scalar_select %p181, %s27, 0
          %s183 = scalar_lea.vmem %s2, %s182
        $region20: #{tpu_custom_call.1} parent=11 // pred_fallthru
          _
      $region12: #{tpu_custom_call.1} parent=5 // pred_fallthru
        _
      %p184 = scmp.lt.s32.totalorder %s16, 2
      // Predicated region
      $region21: #{tpu_custom_call.1} parent=5 // pred_check
        %p185 = pneg %p184
      $region22: #{tpu_custom_call.1} parent=5 // pred_check_branch
        %187 = sbr.rel (%p185) target = $region24
      $region23: #{tpu_custom_call.1} parent=5 // pred_region
        // Predicated region
        $region25: #{tpu_custom_call.1} parent=23 // pred_check
          %p188 = pneg %p57
        $region26: #{tpu_custom_call.1} parent=23 // pred_check_branch
          %190 = sbr.rel (%p188) target = $region28
        $region27: #{tpu_custom_call.1} parent=23 // pred_region
          %s191 = sand.u32 %s47, 1
          %s192 = scalar_lea.sflag [#allocation3], %s191
          %s193 = sand.u32 %s47, 1
          %s194 = smul.addr %s193, 8
          %s195 = scalar_lea.vmem [#allocation2], %s194
          %197 = vsyncadd %s192, 0
          %s198 = sadd.s32 %s25, %s23
          %s199 = smul.addr %s198, 8
          %s200 = scalar_lea.hbm %s0, %s199
          %s202 = sshll.u32 %s200, 4
          %s203 = int_to_ptr.hbm [resolvable:$true] %s202
          %s204 = sshll.u32 %s195, 4
          %s205 = int_to_ptr.vmem [resolvable:$true] %s204
          %207 = dma.hbm_to_vmem [thread:$0]  %s203, 128, %s205, %s192
        $region28: #{tpu_custom_call.1} parent=23 // pred_fallthru
          _
      $region24: #{tpu_custom_call.1} parent=5 // pred_fallthru
        _
      %p208 = scmp.le.s32.totalorder 1, %s16
      %p209 = scmp.lt.s32.totalorder %s16, 3
      %p210 = pnand %p208, %p209
      %p211 = pneg %p210
      // Predicated region
      $region29: #{tpu_custom_call.1} parent=5 // pred_check
        _
      $region30: #{tpu_custom_call.1} parent=5 // pred_check_branch
        %213 = sbr.rel (%p210) target = $region32
      $region31: #{tpu_custom_call.1} parent=5 // pred_region
        %s214 = ssub.s32 %s16, 1
        %s215 = sand.u32 %s50, 1
        %s216 = scalar_lea.sflag [#allocation3], %s215
        %s217 = sand.u32 %s50, 1
        %s218 = smul.addr %s217, 8
        %s219 = scalar_lea.vmem [#allocation2], %s218
        // Predicated region
        $region33: #{tpu_custom_call.1} parent=31 // pred_check
          %p220 = pneg %p63
        $region34: #{tpu_custom_call.1} parent=31 // pred_check_branch
          %222 = sbr.rel (%p220) target = $region36
        $region35: #{tpu_custom_call.1} parent=31 // pred_region
          %224 = dma.done %s216, 128
        $region36: #{tpu_custom_call.1} parent=31 // pred_fallthru
          _
        // Predicated region
        $region37: #{tpu_custom_call.1} parent=31 // pred_check
          %p225 = pneg %p91
        $region38: #{tpu_custom_call.1} parent=31 // pred_check_branch
          %227 = sbr.rel (%p225) target = $region40
        $region39: #{tpu_custom_call.1} parent=31 // pred_region
          %229 = dma.done [#allocation6], 2048
        $region40: #{tpu_custom_call.1} parent=31 // pred_fallthru
          _
        %s230 = sand.u32 %s50, 1
        %s231 = scalar_lea.sflag [#allocation3], %s230
        %s232 = sand.u32 %s50, 1
        %s233 = smul.addr %s232, 8
        %s234 = scalar_lea.vmem [#allocation2], %s233
        %p235 = pneg %p63
        %p236 = pneg %p60
        %p237 = pneg %p91
        %p238 = pneg %p88
        %p239 = scmp.lt.s32.totalorder %s27, 0
        %s240 = scalar_select %p239, %s27, 0
        %s241 = scalar_lea.vmem %s2, %s240
        %p242 = pneg %p117
        %p243 = pneg %p114
        %p244 = pneg %p145
        %p245 = pneg %p142
        %s246 = sand.u32 %s132, 1
        %s247 = scalar_lea.sflag [#allocation4], %s246
        %s248 = sand.u32 %s132, 1
        %s249 = smul.addr %s248, 8
        %s250 = scalar_lea.vmem [#allocation7], %s249
        %s251 = smul.u32 16, %s28
        %p252 = scmp.lt.s32.totalorder %s27, 0
        %s253 = scalar_select %p252, %s27, 0
        %s254 = scalar_lea.vmem %s2, %s253
        %p255 = scmp.eq.s32.totalorder %s28, 0
        // Predicated region
        $region41: #{tpu_custom_call.1} parent=31 // pred_check
          %p256 = pneg %p255
        $region42: #{tpu_custom_call.1} parent=31 // pred_check_branch
          %258 = sbr.rel (%p256) target = $region44
        $region43: #{tpu_custom_call.1} parent=31 // pred_region
          %259 = vst [vmem:[%s250] sm:$0xff] 0.0
        $region44: #{tpu_custom_call.1} parent=31 // pred_fallthru
          _
        %v260 = vld [vmem:[%s250] sm:$0xff]
        %v261 = vld [vmem:[%s219] sm:$0xff]
        %v262 = vld [vmem:[#allocation5] sm:$0xff]
        %v263 = vld [vmem:[#allocation5 + $0x8] sm:$0xff]
        %v264 = vld [vmem:[#allocation5 + $0x10] sm:$0xff]
        %v265 = vld [vmem:[#allocation5 + $0x18] sm:$0xff]
        %v266 = vld [vmem:[#allocation5 + $0x20] sm:$0xff]
        %v267 = vld [vmem:[#allocation5 + $0x28] sm:$0xff]
        %v268 = vld [vmem:[#allocation5 + $0x30] sm:$0xff]
        %v269 = vld [vmem:[#allocation5 + $0x38] sm:$0xff]
        %v270 = vld [vmem:[#allocation5 + $0x40] sm:$0xff]
        %v271 = vld [vmem:[#allocation5 + $0x48] sm:$0xff]
        %v272 = vld [vmem:[#allocation5 + $0x50] sm:$0xff]
        %v273 = vld [vmem:[#allocation5 + $0x58] sm:$0xff]
        %v274 = vld [vmem:[#allocation5 + $0x60] sm:$0xff]
        %v275 = vld [vmem:[#allocation5 + $0x68] sm:$0xff]
        %v276 = vld [vmem:[#allocation5 + $0x70] sm:$0xff]
        %v277 = vld [vmem:[#allocation5 + $0x78] sm:$0xff]
        %278 = vmatpush.msra.mxu0 %v277
        %279 = vmatpush.msra.mxu0 %v276
        %280 = vmatpush.msra.mxu0 %v275
        %281 = vmatpush.msra.mxu0 %v274
        %282 = vmatpush.msra.mxu0 %v273
        %283 = vmatpush.msra.mxu0 %v272
        %284 = vmatpush.msra.mxu0 %v271
        %285 = vmatpush.msra.mxu0 %v270
        %286 = vmatpush.msra.mxu0 %v269
        %287 = vmatpush.msra.mxu0 %v268
        %288 = vmatpush.msra.mxu0 %v267
        %289 = vmatpush.msra.mxu0 %v266
        %290 = vmatpush.msra.mxu0 %v265
        %291 = vmatpush.msra.mxu0 %v264
        %292 = vmatpush.msra.mxu0 %v263
        %293 = vmatpush.msra.mxu0 %v262
        %294 = vmatmul.f32.gmra.mxu0 %v261
        %v295 = vpop.f32.mrf.mxu0
        %v296 = vadd.f32 0.0, %v295
        %297 = vdwg.mxu0
        %v298 = vadd.f32 %v260, %v296
        %299 = vst [vmem:[%s250] sm:$0xff] %v298
        // Predicated region
        $region45: #{tpu_custom_call.1} parent=31 // pred_check
          %p300 = pneg %p255
        $region46: #{tpu_custom_call.1} parent=31 // pred_check_branch
          %302 = sbr.rel (%p300) target = $region48
        $region47: #{tpu_custom_call.1} parent=31 // pred_region
          %v303 = vld [vmem:[%s250] sm:$0xff]
          %v304 = vld [vmem:[%s254] sm:$0x1]
          %v306 = vperm.slane %v304, 0
          %v308 = vadd.f32 %v303, %v306
          %309 = vst [vmem:[%s250] sm:$0xff] %v308
        $region48: #{tpu_custom_call.1} parent=31 // pred_fallthru
          _
        %s310 = sand.u32 %s132, 1
        %s311 = scalar_lea.sflag [#allocation4], %s310
        %s312 = sand.u32 %s132, 1
        %s313 = smul.addr %s312, 8
        %s314 = scalar_lea.vmem [#allocation7], %s313
        // Predicated region
        $region49: #{tpu_custom_call.1} parent=31 // pred_check
          %p315 = pneg %p142
        $region50: #{tpu_custom_call.1} parent=31 // pred_check_branch
          %317 = sbr.rel (%p315) target = $region52
        $region51: #{tpu_custom_call.1} parent=31 // pred_region
          %319 = vsyncadd %s311, 0
          %s320 = sadd.s32 %s27, %s26
          %s321 = smul.addr %s320, 8
          %s322 = scalar_lea.hbm %s3, %s321
          %s324 = sshll.u32 %s314, 4
          %s325 = int_to_ptr.vmem [resolvable:$true] %s324
          %s326 = sshll.u32 %s322, 4
          %s327 = int_to_ptr.hbm [resolvable:$true] %s326
          %329 = dma.vmem_to_hbm [thread:$0]  %s325, 128, %s327, %s311
        $region52: #{tpu_custom_call.1} parent=31 // pred_fallthru
          _
      $region32: #{tpu_custom_call.1} parent=5 // pred_fallthru
        _
      %p330 = scmp.le.s32.totalorder 2, %s16
      // Predicated region
      $region53: #{tpu_custom_call.1} parent=5 // pred_check
        %p331 = pneg %p330
      $region54: #{tpu_custom_call.1} parent=5 // pred_check_branch
        %333 = sbr.rel (%p331) target = $region56
      $region55: #{tpu_custom_call.1} parent=5 // pred_region
        %s334 = ssub.s32 %s16, 2
        // Predicated region
        $region57: #{tpu_custom_call.1} parent=55 // pred_check
          %p335 = pneg %p148
        $region58: #{tpu_custom_call.1} parent=55 // pred_check_branch
          %337 = sbr.rel (%p335) target = $region60
        $region59: #{tpu_custom_call.1} parent=55 // pred_region
          %s338 = sand.u32 %s133, 1
          %s339 = scalar_lea.sflag [#allocation4], %s338
          %s340 = sand.u32 %s133, 1
          %s341 = smul.addr %s340, 8
          %s342 = scalar_lea.vmem [#allocation7], %s341
          %344 = dma.done %s339, 128
        $region60: #{tpu_custom_call.1} parent=55 // pred_fallthru
          _
      $region56: #{tpu_custom_call.1} parent=5 // pred_fallthru
        _
    $region6: #{tpu_custom_call.1} parent=1 // loop_footer
      %s20 = sadd.s32 1, %s16
    $region7: #{tpu_custom_call.1} parent=1 // loop_footer_branch
      %15 = sbr.rel target = $region3
    $region8: #{tpu_custom_call.1} parent=1 // loop_exit
      _
    %345 = vsyncpa [#allocation3], 1
    %s346 = scalar_lea.sflag [#allocation3], 1
    %347 = vsyncpa %s346, 1
    %348 = vsyncpa [#allocation6], 1
    %349 = vsyncpa [#allocation4], 1
    %s350 = scalar_lea.sflag [#allocation4], 1
    %351 = vsyncpa %s350, 1

</llo_original>
